<compile_context>
chip_gen: v6e
topology: v6e:2x2x1
jax: 0.10.0
libtpu: 0.0.40
codegen_flags: <defaults>
</compile_context>

<pallas_src>
import functools
import math

import jax
import jax.numpy as jnp
import numpy as np
from jax.experimental import pallas as pl
from jax.experimental.pallas import tpu as pltpu


# ----------------------------------------------------------------------------
# Example expression_fns used by the EEG models (deterministic, no params).
# ----------------------------------------------------------------------------
def square(x):
    return x * x


def safe_log(x, eps=1e-6):
    """log(clamp(x, min=eps)) -- matches braindecode's safe_log."""
    return jnp.log(jnp.maximum(x, eps))


def square_then_safe_log(x, eps=1e-6):
    """Fused square -> safe_log chain (the classic ShallowFBCSPNet hot path).

    Fusing the chain into ONE Expression means a single pallas_call, i.e. a
    single HBM read+write of the activation instead of two.  The extra log /
    max runs on the EUP/VPU slots which are idle in a mem-bound kernel.
    """
    return safe_log(square(x), eps)


# ----------------------------------------------------------------------------
# Pallas kernel: apply an elementwise expression_fn on one VMEM block.
# NOTE: a ragged final grid block evaluates expression_fn on out-of-bounds
# garbage rows; the corresponding stores are masked, so this is safe for
# pointwise fns (square/log/max) but is documented behaviour, not a contract.
# ----------------------------------------------------------------------------
def _elementwise_kernel(x_ref, o_ref, *, expression_fn):
    o_ref[...] = expression_fn(x_ref[...]).astype(o_ref.dtype)


_LANE = 128                       # lane-dense slab width
_TARGET_BLOCK_BYTES = 2 << 20     # ~2 MiB/block; 2x2 double-buffering = 8 MiB
_SPLIT_THRESHOLD_BYTES = 512 << 10  # >= this -> at least 2 (even #) blocks


def _round_up_to(x, m):
    return ((x + m - 1) // m) * m


def _choose_row_blocking(rows, bytes_per_row):
    """Pick (block_rows, num_blocks) for a (rows, cols) slab.

    Small slabs (< ~512 KiB) stay a single full-extent block (always legal).
    Larger slabs are split into an EVEN number of blocks (v7x: 2 TensorCores
    each pull HBM bandwidth on a "parallel" grid axis; even grid = balanced),
    each block a multiple of 8 rows and <= ~2 MiB, sized so the final block
    is full (or nearly full) rather than a tiny ragged remainder.
    """
    total_bytes = rows * bytes_per_row
    if total_bytes < _SPLIT_THRESHOLD_BYTES or rows <= 8:
        return rows, 1

    max_block_rows = max(8, (_TARGET_BLOCK_BYTES // bytes_per_row) // 8 * 8)
    n_blocks = max(2, pl.cdiv(rows, max_block_rows))
    if n_blocks % 2:
        n_blocks += 1  # even grid -> balanced split across v7x's 2 TCs

    block_rows = min(rows, _round_up_to(pl.cdiv(rows, n_blocks), 8))
    grid = pl.cdiv(rows, block_rows)
    if grid > 1 and grid % 2:
        # Rounding to 8 rows collapsed the grid to an odd count; try one more
        # block so the per-TC split stays balanced.
        alt_rows = min(rows, _round_up_to(pl.cdiv(rows, grid + 1), 8))
        alt_grid = pl.cdiv(rows, alt_rows)
        if alt_grid % 2 == 0:
            block_rows, grid = alt_rows, alt_grid
    return block_rows, grid


def _pallas_elementwise(expression_fn, x, out_dtype=None, donate_input=False):
    """Run `expression_fn` elementwise over `x` via a tiled Pallas kernel."""
    orig_shape = x.shape

    # Output dtype of the expression (trace-time only; supports dtype-changing
    # elementwise fns such as casts), unless explicitly overridden (e.g. bf16
    # output to halve the write half of the HBM traffic).
    if out_dtype is None:
        try:
            out_dtype = jax.eval_shape(
                expression_fn, jax.ShapeDtypeStruct(x.shape, x.dtype)
            ).dtype
        except Exception:
            out_dtype = x.dtype
    out_dtype = np.dtype(out_dtype)
    in_dtype = np.dtype(x.dtype)
    itembytes = max(in_dtype.itemsize, out_dtype.itemsize)

    n = x.size
    if n % _LANE == 0:
        # Common case (conv activations): lane-dense (rows, 128) view.
        # With allow_input_fusion the reshape producer fuses into the kernel's
        # input pipeline, so this costs no extra HBM pass.
        rows, cols = n // _LANE, _LANE
    else:
        # Ragged total size: use the tensor's natural trailing dim as lanes so
        # NO jnp.pad and NO trailing slice (each a full extra HBM round trip)
        # is needed.  Lanes may be < 128 (masked vst) but HBM traffic stays at
        # ~one read + one write.
        if x.ndim < 2:
            # 1-D ragged: a Pallas view would be lane/sublane-starved; plain
            # XLA is already bandwidth-optimal for this.
            return expression_fn(x).astype(out_dtype)
        rows = math.prod(x.shape[:-1])
        cols = x.shape[-1]
        if cols * 8 * itembytes > _TARGET_BLOCK_BYTES:
            # A single 8-row block would blow the VMEM budget; fall back.
            return expression_fn(x).astype(out_dtype)

    x2d = x.reshape(rows, cols)
    block_rows, num_blocks = _choose_row_blocking(rows, cols * itembytes)

    kernel = functools.partial(_elementwise_kernel, expression_fn=expression_fn)

    extra_kwargs = {}
    if donate_input and in_dtype == out_dtype:
        # Reuse the input's HBM buffer for the output (caller guarantees the
        # input is dead after this op; otherwise XLA inserts a copy and the
        # result is still correct).
        extra_kwargs["input_output_aliases"] = {0: 0}

    out2d = pl.pallas_call(
        kernel,
        out_shape=jax.ShapeDtypeStruct((rows, cols), out_dtype),
        grid=(num_blocks,),
        in_specs=[pl.BlockSpec((block_rows, cols), lambda i: (i, 0))],
        out_specs=pl.BlockSpec((block_rows, cols), lambda i: (i, 0)),
        compiler_params=pltpu.CompilerParams(
            # "parallel": shards the row-block grid across v7x's 2 TensorCores
            # (measured no-op on single-TC v5e/v6e).
            dimension_semantics=("parallel",),
            # Let XLA fuse the producer (pool/conv epilogue or the view
            # reshape) straight into the kernel's input pipeline: removes one
            # full HBM write+read of the activation.
            allow_input_fusion=[True],
        ),
        **extra_kwargs,
    )(x2d)

    return out2d.reshape(orig_shape)  # pure view back, no extra copy


def _is_jax_arraylike(v):
    return isinstance(v, jax.Array) or (
        hasattr(v, "shape") and hasattr(v, "dtype") and hasattr(v, "reshape")
    )


def _is_elementwise_compatible(expression_fn, x):
    """Cheap trace-time guard: the expression maps x to a single array of the
    same shape.  Catches reshape/flatten/squeeze-style Expression usages (which
    must NOT go through the flattened Pallas path).

    WARNING: shape-preserving but NON-pointwise expressions (transpose of a
    square tensor, flip/roll, softmax over an axis, x - x.mean(), per-channel
    scaling) are not detectable this way and would be applied to the 2-D view
    -> pass elementwise=False for such expressions."""
    try:
        out = jax.eval_shape(expression_fn, jax.ShapeDtypeStruct(x.shape, x.dtype))
    except Exception:
        return False
    return isinstance(out, jax.ShapeDtypeStruct) and out.shape == x.shape


# ----------------------------------------------------------------------------
# Expression module (JAX/Pallas analogue of the PyTorch nn.Module).
# ----------------------------------------------------------------------------
class Expression:
    """Compute given expression on forward pass.

    Single-array expressions whose output shape matches the input (the
    elementwise hot path: `square`, `safe_log`, fused chains) run inside a
    Pallas TPU kernel over a lane-dense 2-D view of the tensor.  Multi-argument
    or shape-changing expressions fall back to plain JAX, preserving the
    original module's semantics.

    Parameters
    ----------
    expression_fn : callable
    elementwise : bool or None
        True  -> always use the Pallas elementwise path (caller guarantees
                 the expression is strictly pointwise).
        False -> always apply expression_fn directly (plain JAX).
        None  -> auto-detect via a trace-time shape check (default).  NOTE:
                 shape-preserving but non-pointwise fns are NOT detected; pass
                 elementwise=False for those.
    out_dtype : dtype or None
        Optional output dtype override (e.g. jnp.bfloat16) to halve the write
        half of the HBM traffic when the consumer tolerates it.
    donate_input : bool
        If True and the output dtype equals the input dtype, the kernel output
        aliases the input's HBM buffer (use only when the input is dead after
        this op; otherwise XLA inserts a defensive copy).
    """

    def __init__(self, expression_fn, elementwise=None, out_dtype=None,
                 donate_input=False):
        self.expression_fn = expression_fn
        self.elementwise = elementwise
        self.out_dtype = out_dtype
        self.donate_input = donate_input

    def __call__(self, *x):
        if (
            self.elementwise is not False
            and len(x) == 1
            and _is_jax_arraylike(x[0])
            and getattr(x[0], "size", 0) > 0
            and (
                self.elementwise is True
                or _is_elementwise_compatible(self.expression_fn, x[0])
            )
        ):
            return _pallas_elementwise(
                self.expression_fn, x[0],
                out_dtype=self.out_dtype, donate_input=self.donate_input)
        return self.expression_fn(*x)

    def __repr__(self):
        if hasattr(self.expression_fn, "func") and hasattr(self.expression_fn, "kwargs"):
            expression_str = "{:s} {:s}".format(
                self.expression_fn.func.__name__, str(self.expression_fn.kwargs)
            )
        elif hasattr(self.expression_fn, "__name__"):
            expression_str = self.expression_fn.__name__
        else:
            expression_str = repr(self.expression_fn)
        return self.__class__.__name__ + "(expression=%s) " % expression_str


# ----------------------------------------------------------------------------
# Demo / self-check
# ----------------------------------------------------------------------------
if __name__ == "__main__":
    key = jax.random.PRNGKey(0)
    # NCHW activation tensor, as produced by the EEG conv stack.
    x = jax.random.normal(key, (2, 4, 16, 16), dtype=jnp.float32)

    sq_mod = Expression(square)
    log_mod = Expression(safe_log)
    fused_mod = Expression(square_then_safe_log)  # preferred: one pallas_call

    y_sq = jax.block_until_ready(sq_mod(x))
    y_log = jax.block_until_ready(log_mod(y_sq))     # unfused chain
    y_fused = jax.block_until_ready(fused_mod(x))    # fused chain

    ref_sq = square(x)
    ref_log = safe_log(ref_sq)

    assert y_sq.shape == x.shape and y_sq.dtype == x.dtype
    assert jnp.allclose(y_sq, ref_sq, atol=1e-6, rtol=1e-6)
    assert jnp.allclose(y_log, ref_log, atol=1e-6, rtol=1e-6)
    assert jnp.allclose(y_fused, ref_log, atol=1e-6, rtol=1e-6)

    # Odd-sized tensor (n % 128 != 0): natural (rows, cols) view, no pad/slice.
    x_odd = jax.random.normal(jax.random.PRNGKey(1), (2, 4, 15, 13), dtype=jnp.float32)
    y_odd = jax.block_until_ready(fused_mod(x_odd))
    assert y_odd.shape == x_odd.shape
    assert jnp.allclose(y_odd, safe_log(square(x_odd)), atol=1e-6, rtol=1e-6)

    # Larger tensor: even multi-block grid (balanced across v7x TCs), under jit.
    x_big = jax.random.normal(jax.random.PRNGKey(2), (4, 40, 64, 64), dtype=jnp.float32)
    y_big = jax.block_until_ready(jax.jit(lambda a: fused_mod(a))(x_big))
    assert jnp.allclose(y_big, safe_log(square(x_big)), atol=1e-6, rtol=1e-6)

    # bf16 output override (halves write traffic for a mem-bound kernel).
    bf16_log = Expression(safe_log, out_dtype=jnp.bfloat16)
    y_bf16 = jax.block_until_ready(bf16_log(y_sq))
    assert y_bf16.dtype == jnp.bfloat16
    assert jnp.allclose(y_bf16.astype(jnp.float32), ref_log, atol=3e-2, rtol=3e-2)

    # donate_input: output aliases the (dead) input buffer under jit donation.
    donating_sq = Expression(square, donate_input=True)
    don_fn = jax.jit(lambda a: donating_sq(a), donate_argnums=0)
    tmp = jnp.full((16, 128), 3.0, jnp.float32)
    y_don = jax.block_until_ready(don_fn(tmp))
    assert jnp.allclose(y_don, jnp.full((16, 128), 9.0))

    # Non-elementwise Expression (shape-changing lambda): plain-JAX fallback.
    perm_mod = Expression(lambda a: jnp.transpose(a, (0, 2, 3, 1)))
    y_perm = jax.block_until_ready(perm_mod(x))
    assert y_perm.shape == (2, 16, 16, 4)
    assert jnp.allclose(y_perm, jnp.transpose(x, (0, 2, 3, 1)))

    print("KERNEL_OK")
</pallas_src>

<mosaic_0001>
module attributes {stable_mosaic.version = 11 : i64} {
  func.func @_elementwise_kernel(%arg0: i32, %arg1: memref<16x128xf32, #tpu.memory_space<vmem>>, %arg2: memref<16x128xf32, #tpu.memory_space<vmem>>) attributes {dimension_semantics = [#tpu.dimension_semantics<parallel>], iteration_bounds = array<i64: 1>, scalar_prefetch = 0 : i64, scratch_operands = 0 : i64, tpu.core_type = #tpu.core_type<tc>, window_params = [{transform_indices = @transform_0, window_bounds = array<i64: 16, 128>}, {transform_indices = @transform_1, window_bounds = array<i64: 16, 128>}]} {
    %c0 = arith.constant 0 : index
    %c0_0 = arith.constant 0 : index
    %0 = vector.load %arg1[%c0, %c0_0] : memref<16x128xf32, #tpu.memory_space<vmem>>, vector<16x128xf32>
    %1 = arith.mulf %0, %0 : vector<16x128xf32>
    %c0_1 = arith.constant 0 : index
    %c0_2 = arith.constant 0 : index
    %2 = vector.load %arg2[%c0_1, %c0_2] : memref<16x128xf32, #tpu.memory_space<vmem>>, vector<16x128xf32>
    tpu.vector_store %arg2[%c0_1, %c0_2], %1 {strides = array<i32>} : memref<16x128xf32, #tpu.memory_space<vmem>>, vector<16x128xf32>,
    return
  }
  func.func @transform_0(%arg0: i32) -> (i32, i32) {
    %c0_i32 = arith.constant 0 : i32
    %c0_i32_0 = arith.constant 0 : i32
    return %arg0, %c0_i32 : i32, i32
  }
  func.func @transform_1(%arg0: i32) -> (i32, i32) {
    %c0_i32 = arith.constant 0 : i32
    %c0_i32_0 = arith.constant 0 : i32
    return %arg0, %c0_i32 : i32, i32
  }
}

</mosaic_0001>

<llo_original>
// kernel: tpu_custom_call.1
$region0: #{tpu_custom_call.1}
  #allocation0 [shape = 'u32[]', space=smem, size = 0x4, offset = 0x4, fixed_abs, tag = 'smem constant byte address 0x4 - core index']
  #allocation1 [shape = 'u32[144,128]{1,0:T(1,128)}', space=vmem, size = 0x12000, scoped, tag = 'internal scratch']
  %s0 = inlined_call_operand.hbm [shape: f32[16,128], index: 0, kind: input, shape index: {}]
  %s1 = inlined_call_operand.hbm [shape: f32[16,128], index: 1, kind: output, shape index: {}]
  %s2 = sld [smem:[#allocation0]]
  $region18: #{tpu_custom_call.1} parent=0
    _
  %s4 = ssub.s32 1, %s2
  %s5 = scalar_select 0, %s4, %s2
  $region1: #{tpu_custom_call.1} parent=0
    #allocation2 [shape = 'u8[8192]{0}', space=vmem, size = 0x2000, scoped, tag = 'input window, operand 0, single buffered']
    #allocation3 [shape = 's32[1]{0}', space=sflag, size = 0x4, scoped, tag = 'scoped memory for tpu_custom_call.1']
    #allocation4 [shape = 's32[1]{0}', space=sflag, size = 0x4, scoped, tag = 'scoped memory for tpu_custom_call.1']
    #allocation5 [shape = 'u8[8192]{0}', space=vmem, size = 0x2000, scoped, tag = 'output window, operand 0, single buffered']
    %6 = vsyncpa [#allocation3], 0
    %7 = vsyncpa [#allocation4], 0
    // Predicated region
    $region2: #{tpu_custom_call.1} parent=1 // pred_check
      _
    $region3: #{tpu_custom_call.1} parent=1 // pred_check_branch
      %9 = sbr.rel (0) target = $region5
    $region4: #{tpu_custom_call.1} parent=1 // pred_region
      %s11 = ssub.s32 256, 256
      %12 = vsyncadd [#allocation3], %s11
      %s13 = sshll.u32 [#allocation2], 4
      %s14 = int_to_ptr.vmem [resolvable:$true] %s13
      %19 = dma.hbm_to_vmem [thread:$0]  %s0, 256, %s14, [#allocation3], 128, 128, 8
    $region5: #{tpu_custom_call.1} parent=1 // pred_fallthru
      _
    // Predicated region
    $region6: #{tpu_custom_call.1} parent=1 // pred_check
      _
    $region7: #{tpu_custom_call.1} parent=1 // pred_check_branch
      %21 = sbr.rel (0) target = $region9
    $region8: #{tpu_custom_call.1} parent=1 // pred_region
      %22 = dma.done [#allocation3], 256
    $region9: #{tpu_custom_call.1} parent=1 // pred_fallthru
      _
    %v23 = vld [vmem:[#allocation2] sm:$0xff]
    %v24 = vld [vmem:[#allocation2 + $0x8] sm:$0xff]
    %v25 = vmul.f32 %v23, %v23
    %v26 = vmul.f32 %v24, %v24
    %27 = vst [vmem:[#allocation5] sm:$0xff] %v25
    %28 = vst [vmem:[#allocation5 + $0x8] sm:$0xff] %v26
    // Predicated region
    $region10: #{tpu_custom_call.1} parent=1 // pred_check
      _
    $region11: #{tpu_custom_call.1} parent=1 // pred_check_branch
      %30 = sbr.rel (0) target = $region13
    $region12: #{tpu_custom_call.1} parent=1 // pred_region
      %s32 = ssub.s32 256, 256
      %33 = vsyncadd [#allocation4], %s32
      %s34 = sshll.u32 [#allocation5], 4
      %s35 = int_to_ptr.vmem [resolvable:$true] %s34
      %40 = dma.vmem_to_hbm [thread:$0]  %s35, 256, %s1, [#allocation4], 128, 128, 8
    $region13: #{tpu_custom_call.1} parent=1 // pred_fallthru
      _
    // Predicated region
    $region14: #{tpu_custom_call.1} parent=1 // pred_check
      _
    $region15: #{tpu_custom_call.1} parent=1 // pred_check_branch
      %42 = sbr.rel (0) target = $region17
    $region16: #{tpu_custom_call.1} parent=1 // pred_region
      %43 = dma.done [#allocation4], 256
    $region17: #{tpu_custom_call.1} parent=1 // pred_fallthru
      _
    %44 = vsyncpa [#allocation3], 1
    %45 = vsyncpa [#allocation4], 1

</llo_original>
